<compile_context>
chip_gen: v5e
topology: v5e:2x2
jax: 0.10.0
libtpu: 0.0.40
codegen_flags: <defaults>
</compile_context>

<pallas_src>
import functools

import jax
import jax.numpy as jnp
from jax.experimental import pallas as pl
from jax.experimental.pallas import tpu as pltpu


def _skfusion_kernel(x_ref, wse_ref, wfc2_ref, o_ref, *,
                     C, split0, split1, inv0, inv1, inv2):
    """One grid step over Bt images in lane-dense (Bt, C, H*W) layout.

    x_ref / o_ref : (Bt, C, HW)
    wse_ref       : (C, d)      (se 1x1 conv weight, pre-transposed)
    wfc2_ref      : (d, 3*C)    (fc2 1x1 conv weight, pre-transposed)
    """
    HW = x_ref.shape[2]
    x = x_ref[...].astype(jnp.float32)                                # (Bt, C, HW)

    # Flattened-position index; the three H-regions are contiguous in H*W.
    col = jax.lax.broadcasted_iota(jnp.int32, (1, 1, HW), 2)
    in_r0 = col < split0
    in_r1 = col < split1

    # Sum of the three per-region AdaptiveAvgPool2d(1) means as ONE weighted
    # lane reduction:  y[b,c] = sum_p x[b,c,p] * (1 / count(region(p)))
    pool_w = jnp.where(in_r0, inv0, jnp.where(in_r1, inv1, inv2))     # (1,1,HW)
    y = jnp.sum(x * pool_w, axis=2)                                   # (Bt, C)

    # se: 1x1 conv (C -> d) + ReLU, batched over Bt.
    z = jnp.maximum(
        jnp.dot(y, wse_ref[...], preferred_element_type=jnp.float32), 0.0)    # (Bt, d)
    # fc2: 1x1 conv (d -> 3*C), M-major channel layout (matches torch reshape).
    s = jnp.dot(z, wfc2_ref[...], preferred_element_type=jnp.float32)         # (Bt, 3C)

    # Softmax over the 3 regions.
    sa, sb, sc = s[:, :C], s[:, C:2 * C], s[:, 2 * C:]
    mx = jnp.maximum(jnp.maximum(sa, sb), sc)
    ea = jnp.exp(sa - mx)
    eb = jnp.exp(sb - mx)
    ec = jnp.exp(sc - mx)
    inv_den = pl.reciprocal(ea + eb + ec, approx=False)
    a = (ea * inv_den)[:, :, None]                                    # (Bt, C, 1)
    b = (eb * inv_den)[:, :, None]
    c = (ec * inv_den)[:, :, None]

    # Single unmasked full-block scaled store.
    scale = jnp.where(in_r0, a, jnp.where(in_r1, b, c))               # (Bt, C, HW)
    o_ref[...] = (x * scale).astype(o_ref.dtype)


def _pick_block_b(B, bytes_per_img, budget_bytes=2 * 1024 * 1024):
    """Largest divisor of B whose block fits the VMEM budget.

    Keeps grid length >= 2 when B > 1 so v7x's two TensorCores both get work,
    and stays conservative for v7x's 64 MiB VMEM (double-buffered in + out).
    """
    cap = max(1, budget_bytes // max(1, bytes_per_img))
    best = 1
    for cand in range(1, B + 1):
        if B % cand != 0 or cand > cap:
            continue
        if B > 1 and (B // cand) < 2:
            continue
        best = cand
    return best


def skfusion_pallas(x, w_se, w_fc2, *, M=3, block_b=None):
    """x: (B, C, H, W) f32, w_se: (d, C) f32, w_fc2: (M*C, d) f32."""
    B, C, H, W = x.shape
    d = w_se.shape[0]
    out_c = w_fc2.shape[0]
    if M != 3:
        raise ValueError("SKFusion.forward only supports M == 3 regions.")
    if out_c != M * C:
        raise ValueError("out_channels must equal M * in_channels.")

    h1 = H // 3
    h2 = (2 * H) // 3
    HW = H * W
    itemsize = jnp.dtype(x.dtype).itemsize

    # Lane-dense layout; regions stay contiguous slices of the H*W axis.
    x2d = x.reshape(B, C, HW)
    wse_t = jnp.asarray(w_se).T          # (C, d)
    wfc2_t = jnp.asarray(w_fc2).T        # (d, M*C)

    bt = block_b if block_b is not None else _pick_block_b(B, C * HW * itemsize)
    assert B % bt == 0

    kernel = functools.partial(
        _skfusion_kernel,
        C=C,
        split0=h1 * W,
        split1=h2 * W,
        inv0=1.0 / float(h1 * W),
        inv1=1.0 / float((h2 - h1) * W),
        inv2=1.0 / float((H - h2) * W),
    )

    cost = pl.CostEstimate(
        flops=int(2 * B * (C * d + d * M * C) + 4 * B * C * HW),
        transcendentals=int(B * M * C),
        bytes_accessed=int(2 * B * C * HW * itemsize + (C * d + d * M * C) * itemsize),
    )

    out2d = pl.pallas_call(
        kernel,
        out_shape=jax.ShapeDtypeStruct((B, C, HW), x.dtype),
        grid_spec=pltpu.PrefetchScalarGridSpec(
            num_scalar_prefetch=0,
            grid=(B // bt,),
            in_specs=[
                pl.BlockSpec((bt, C, HW), lambda i: (i, 0, 0)),
                pl.BlockSpec((C, d), lambda i: (0, 0)),
                pl.BlockSpec((d, M * C), lambda i: (0, 0)),
            ],
            out_specs=pl.BlockSpec((bt, C, HW), lambda i: (i, 0, 0)),
        ),
        compiler_params=pltpu.CompilerParams(
            dimension_semantics=("parallel",),
            vmem_limit_bytes=32 * 1024 * 1024,
        ),
        cost_estimate=cost,
    )(x2d, wse_t, wfc2_t)

    return out2d.reshape(B, C, H, W)


def skfusion_ref(x, w_se, w_fc2, *, M=3):
    """Pure-JAX reference mirroring the PyTorch forward."""
    B, C, H, W = x.shape
    h1, h2 = H // 3, (2 * H) // 3
    x1, x2, x3 = x[:, :, :h1, :], x[:, :, h1:h2, :], x[:, :, h2:, :]
    y = x1.mean((2, 3)) + x2.mean((2, 3)) + x3.mean((2, 3))          # (B, C)
    z = jnp.maximum(y @ w_se.T, 0.0)                                  # (B, d)
    s = (z @ w_fc2.T).reshape(B, M, C)                                # (B, M, C)
    attn = jax.nn.softmax(s, axis=1)
    a = attn[:, 0][:, :, None, None]
    b = attn[:, 1][:, :, None, None]
    c = attn[:, 2][:, :, None, None]
    return jnp.concatenate([x1 * a, x2 * b, x3 * c], axis=2)


if __name__ == "__main__":
    # Small shapes consistent with the module: out_channels = M * in_channels.
    B, C, H, W = 8, 4, 12, 16
    M, r, L = 3, 16, 32
    out_channels = M * C
    d = max(C // r, L)  # = 32

    key = jax.random.PRNGKey(0)
    kx, k1, k2 = jax.random.split(key, 3)
    x = jax.random.normal(kx, (B, C, H, W), dtype=jnp.float32)
    # conv weights (1x1, no bias) squeezed to matrices:
    w_se = jax.random.normal(k1, (d, C), dtype=jnp.float32) * 0.1     # se conv
    w_fc2 = jax.random.normal(k2, (out_channels, d), dtype=jnp.float32) * 0.1

    out = jax.block_until_ready(skfusion_pallas(x, w_se, w_fc2, M=M))

    ref = skfusion_ref(x, w_se, w_fc2, M=M)
    assert out.shape == (B, C, H, W)
    assert jnp.allclose(out, ref, atol=1e-5, rtol=1e-5), "mismatch vs reference"

    print("KERNEL_OK")
</pallas_src>

<mosaic_0001>
module attributes {stable_mosaic.version = 11 : i64} {
  func.func @_skfusion_kernel(%arg0: i32, %arg1: memref<4x4x192xf32, #tpu.memory_space<vmem>>, %arg2: memref<4x32xf32, #tpu.memory_space<vmem>>, %arg3: memref<32x12xf32, #tpu.memory_space<vmem>>, %arg4: memref<4x4x192xf32, #tpu.memory_space<vmem>>) attributes {dimension_semantics = [#tpu.dimension_semantics<parallel>], iteration_bounds = array<i64: 2>, scalar_prefetch = 0 : i64, scratch_operands = 0 : i64, tpu.core_type = #tpu.core_type<tc>, window_params = [{transform_indices = @transform_0, window_bounds = array<i64: 4, 4, 192>}, {pipeline_mode = #tpu.pipeline_mode<synchronous>, transform_indices = @transform_1, window_bounds = array<i64: 4, 32>}, {pipeline_mode = #tpu.pipeline_mode<synchronous>, transform_indices = @transform_2, window_bounds = array<i64: 32, 12>}, {transform_indices = @transform_3, window_bounds = array<i64: 4, 4, 192>}]} {
    %c0 = arith.constant 0 : index
    %c0_0 = arith.constant 0 : index
    %c0_1 = arith.constant 0 : index
    %0 = vector.load %arg1[%c0, %c0_0, %c0_1] : memref<4x4x192xf32, #tpu.memory_space<vmem>>, vector<4x4x192xf32>
    %1 = tpu.iota {dimensions = array<i32: 2>} : vector<1x1x192xi32>
    %c64_i32 = arith.constant 64 : i32
    %2 = vector.broadcast %c64_i32 : i32 to vector<1x1x192xi32>
    %3 = arith.cmpi slt, %1, %2 : vector<1x1x192xi32>
    %c128_i32 = arith.constant 128 : i32
    %4 = vector.broadcast %c128_i32 : i32 to vector<1x1x192xi32>
    %5 = arith.cmpi slt, %1, %4 : vector<1x1x192xi32>
    %cst = arith.constant 1.562500e-02 : f32
    %cst_2 = arith.constant 1.562500e-02 : f32
    %6 = vector.broadcast %cst : f32 to vector<1x1x192xf32>
    %7 = vector.broadcast %cst_2 : f32 to vector<1x1x192xf32>
    %8 = arith.select %5, %6, %7 : vector<1x1x192xi1>, vector<1x1x192xf32>
    %cst_3 = arith.constant 1.562500e-02 : f32
    %9 = vector.broadcast %cst_3 : f32 to vector<1x1x192xf32>
    %10 = arith.select %3, %9, %8 : vector<1x1x192xi1>, vector<1x1x192xf32>
    %11 = vector.broadcast %10 : vector<1x1x192xf32> to vector<4x4x192xf32>
    %12 = arith.mulf %0, %11 : vector<4x4x192xf32>
    %cst_4 = arith.constant dense<0.000000e+00> : vector<4x4xf32>
    %13 = vector.multi_reduction <add>, %12, %cst_4 [2] : vector<4x4x192xf32> to vector<4x4xf32>
    %c0_5 = arith.constant 0 : index
    %c0_6 = arith.constant 0 : index
    %14 = vector.load %arg2[%c0_5, %c0_6] : memref<4x32xf32, #tpu.memory_space<vmem>>, vector<4x32xf32>
    %cst_7 = arith.constant dense<0.000000e+00> : vector<4x32xf32>
    %15 = tpu.matmul %13, %14, %cst_7 {dimension_numbers = #tpu.dot_dimension_numbers<[1], [0], [0], [1], [0, 0, 1, 1], [], []>} : vector<4x4xf32>, vector<4x32xf32>, vector<4x32xf32> -> vector<4x32xf32>
    %cst_8 = arith.constant 0.000000e+00 : f32
    %16 = vector.broadcast %cst_8 : f32 to vector<4x32xf32>
    %17 = arith.maximumf %15, %16 : vector<4x32xf32>
    %c0_9 = arith.constant 0 : index
    %c0_10 = arith.constant 0 : index
    %18 = vector.load %arg3[%c0_9, %c0_10] : memref<32x12xf32, #tpu.memory_space<vmem>>, vector<32x12xf32>
    %cst_11 = arith.constant dense<0.000000e+00> : vector<4x12xf32>
    %19 = tpu.matmul %17, %18, %cst_11 {dimension_numbers = #tpu.dot_dimension_numbers<[1], [0], [0], [1], [0, 0, 1, 1], [], []>} : vector<4x32xf32>, vector<32x12xf32>, vector<4x12xf32> -> vector<4x12xf32>
    %20 = vector.extract_strided_slice %19 {offsets = [0, 0], sizes = [4, 4], strides = [1, 1]} : vector<4x12xf32> to vector<4x4xf32>
    %21 = vector.extract_strided_slice %19 {offsets = [0, 4], sizes = [4, 4], strides = [1, 1]} : vector<4x12xf32> to vector<4x4xf32>
    %22 = vector.extract_strided_slice %19 {offsets = [0, 8], sizes = [4, 4], strides = [1, 1]} : vector<4x12xf32> to vector<4x4xf32>
    %23 = arith.maximumf %20, %21 : vector<4x4xf32>
    %24 = arith.maximumf %23, %22 : vector<4x4xf32>
    %25 = arith.subf %20, %24 : vector<4x4xf32>
    %26 = math.exp %25 : vector<4x4xf32>
    %27 = arith.subf %21, %24 : vector<4x4xf32>
    %28 = math.exp %27 : vector<4x4xf32>
    %29 = arith.subf %22, %24 : vector<4x4xf32>
    %30 = math.exp %29 : vector<4x4xf32>
    %31 = arith.addf %26, %28 : vector<4x4xf32>
    %32 = arith.addf %31, %30 : vector<4x4xf32>
    %33 = tpu.reciprocal %32 : vector<4x4xf32> -> vector<4x4xf32>
    %34 = arith.mulf %26, %33 : vector<4x4xf32>
    %35 = vector.shape_cast %34 : vector<4x4xf32> to vector<4x4x1xf32>
    %36 = arith.mulf %28, %33 : vector<4x4xf32>
    %37 = vector.shape_cast %36 : vector<4x4xf32> to vector<4x4x1xf32>
    %38 = arith.mulf %30, %33 : vector<4x4xf32>
    %39 = vector.shape_cast %38 : vector<4x4xf32> to vector<4x4x1xf32>
    %40 = vector.shape_cast %5 : vector<1x1x192xi1> to vector<1x1x192xi1>
    %41 = vector.broadcast %40 : vector<1x1x192xi1> to vector<4x4x192xi1>
    %42 = vector.shape_cast %37 : vector<4x4x1xf32> to vector<4x4x1xf32>
    %43 = vector.broadcast %42 : vector<4x4x1xf32> to vector<4x4x192xf32>
    %44 = vector.shape_cast %39 : vector<4x4x1xf32> to vector<4x4x1xf32>
    %45 = vector.broadcast %44 : vector<4x4x1xf32> to vector<4x4x192xf32>
    %46 = arith.select %41, %43, %45 : vector<4x4x192xi1>, vector<4x4x192xf32>
    %47 = vector.shape_cast %3 : vector<1x1x192xi1> to vector<1x1x192xi1>
    %48 = vector.broadcast %47 : vector<1x1x192xi1> to vector<4x4x192xi1>
    %49 = vector.shape_cast %35 : vector<4x4x1xf32> to vector<4x4x1xf32>
    %50 = vector.broadcast %49 : vector<4x4x1xf32> to vector<4x4x192xf32>
    %51 = arith.select %48, %50, %46 : vector<4x4x192xi1>, vector<4x4x192xf32>
    %52 = arith.mulf %0, %51 : vector<4x4x192xf32>
    %c0_12 = arith.constant 0 : index
    %c0_13 = arith.constant 0 : index
    %c0_14 = arith.constant 0 : index
    %53 = vector.load %arg4[%c0_12, %c0_13, %c0_14] : memref<4x4x192xf32, #tpu.memory_space<vmem>>, vector<4x4x192xf32>
    tpu.vector_store %arg4[%c0_12, %c0_13, %c0_14], %52 {strides = array<i32>} : memref<4x4x192xf32, #tpu.memory_space<vmem>>, vector<4x4x192xf32>,
    return
  }
  func.func @transform_0(%arg0: i32) -> (i32, i32, i32) {
    %c0_i32 = arith.constant 0 : i32
    %c0_i32_0 = arith.constant 0 : i32
    %c0_i32_1 = arith.constant 0 : i32
    return %arg0, %c0_i32, %c0_i32_0 : i32, i32, i32
  }
  func.func @transform_1(%arg0: i32) -> (i32, i32) {
    %c0_i32 = arith.constant 0 : i32
    %c0_i32_0 = arith.constant 0 : i32
    %c0_i32_1 = arith.constant 0 : i32
    return %c0_i32, %c0_i32_0 : i32, i32
  }
  func.func @transform_2(%arg0: i32) -> (i32, i32) {
    %c0_i32 = arith.constant 0 : i32
    %c0_i32_0 = arith.constant 0 : i32
    %c0_i32_1 = arith.constant 0 : i32
    return %c0_i32, %c0_i32_0 : i32, i32
  }
  func.func @transform_3(%arg0: i32) -> (i32, i32, i32) {
    %c0_i32 = arith.constant 0 : i32
    %c0_i32_0 = arith.constant 0 : i32
    %c0_i32_1 = arith.constant 0 : i32
    return %arg0, %c0_i32, %c0_i32_0 : i32, i32, i32
  }
}

</mosaic_0001>

<llo_original>
// kernel: tpu_custom_call.1
$region0: #{tpu_custom_call.1}
  #allocation0 [shape = 'u32[]', space=smem, size = 0x4, offset = 0x4, fixed_abs, tag = 'smem constant byte address 0x4 - core index']
  #allocation1 [shape = 'u32[72,128]{1,0:T(1,128)}', space=vmem, size = 0x9000, scoped, tag = 'internal scratch']
  %s0 = inlined_call_operand.hbm [shape: f32[8,4,192], index: 0, kind: input, shape index: {}]
  %s1 = inlined_call_operand.vmem [shape: f32[4,32], index: 1, kind: input, shape index: {}]
  %s2 = inlined_call_operand.vmem [shape: f32[32,12], index: 2, kind: input, shape index: {}]
  %s3 = inlined_call_operand.hbm [shape: f32[8,4,192], index: 3, kind: output, shape index: {}]
  %s4 = sld [smem:[#allocation0]]
  $region49: #{tpu_custom_call.1} parent=0
    _
  %s6 = ssub.s32 1, %s4
  %s7 = scalar_select 0, %s6, %s4
  $region1: #{tpu_custom_call.1} parent=0
    #allocation2 [shape = 'u8[32768]{0}', space=vmem, size = 0x8000, scoped, tag = 'input window, operand 0']
    #allocation3 [shape = 's32[2]{0}', space=sflag, size = 0x8, scoped, tag = 'scoped memory for tpu_custom_call.1']
    #allocation4 [shape = 's32[2]{0}', space=sflag, size = 0x8, scoped, tag = 'scoped memory for tpu_custom_call.1']
    #allocation5 [shape = 'u8[32768]{0}', space=vmem, size = 0x8000, scoped, tag = 'output window, operand 0']
    %8 = vsyncpa [#allocation3], 0
    %s9 = scalar_lea.sflag [#allocation3], 1
    %10 = vsyncpa %s9, 0
    %11 = vsyncpa [#allocation4], 0
    %s12 = scalar_lea.sflag [#allocation4], 1
    %13 = vsyncpa %s12, 0
    loop: start=0, step=1, limit=4
    $region2: #{tpu_custom_call.1} parent=1 // loop_pre_header
      _
    $region3: #{tpu_custom_call.1} parent=1 // loop_header
      %s15 = sphi 0, %s19
      %p16 = scmp.ge.s32.totalorder %s15, 4
      %s25 = sphi 0, %s27
      %s28 = sphi 0, %s25
      %s29 = sphi 0, %s28
      %s45 = sphi 0, %s29
      %s49 = sphi 0, %s49
      %s51 = sphi 0, %s49
      %s52 = sphi 0, %s51
      %s66 = sphi 0, %s52
      %s70 = sphi 0, %s70
      %s72 = sphi 0, %s70
      %s73 = sphi 0, %s72
      %s87 = sphi 0, %s73
      %s93 = sphi 0, %s95
      %s96 = sphi 0, %s93
      %s97 = sphi 0, %s96
      %s113 = sphi 0, %s97
    $region4: #{tpu_custom_call.1} parent=1 // loop_header_branch
      %18 = sbr.rel (%p16) target = $region8
    $region5: #{tpu_custom_call.1} parent=1 // loop_body
      %s20 = ssub.s32 %s15, 1
      %s21 = ssub.s32 %s15, 2
      %s22 = sadd.s32 %s15, 1
      %s23 = ssub.s32 %s15, %s22
      %p24 = scmp.eq.s32.totalorder %s23, 0
      %s26 = sadd.s32 %s25, 1
      %s27 = scalar_select %p24, %s25, %s26
      %p30 = pneg %p24
      %p31 = scmp.eq.s32.totalorder %s15, 1
      %p32 = por %p30, %p31
      %p33 = scmp.ne.s32.totalorder %s25, %s28
      %p34 = scmp.eq.s32.totalorder %s15, 0
      %p35 = por %p33, %p34
      %p36 = scmp.ne.s32.totalorder %s25, %s28
      %p37 = scmp.eq.s32.totalorder %s20, 1
      %p38 = por %p36, %p37
      %p39 = scmp.ne.s32.totalorder %s28, %s29
      %p40 = scmp.eq.s32.totalorder %s20, 0
      %p41 = por %p39, %p40
      %p42 = scmp.ne.s32.totalorder %s28, %s29
      %p43 = scmp.eq.s32.totalorder %s21, 1
      %p44 = por %p42, %p43
      %p46 = scmp.ne.s32.totalorder %s29, %s45
      %p47 = scmp.eq.s32.totalorder %s21, 0
      %p48 = por %p46, %p47
      %s50 = sadd.s32 %s49, 1
      %p53 = scmp.eq.s32.totalorder %s15, 1
      %p54 = scmp.ne.s32.totalorder %s49, %s51
      %p55 = scmp.eq.s32.totalorder %s15, 0
      %p56 = por %p54, %p55
      %p57 = scmp.ne.s32.totalorder %s49, %s51
      %p58 = scmp.eq.s32.totalorder %s20, 1
      %p59 = por %p57, %p58
      %p60 = scmp.ne.s32.totalorder %s51, %s52
      %p61 = scmp.eq.s32.totalorder %s20, 0
      %p62 = por %p60, %p61
      %p63 = scmp.ne.s32.totalorder %s51, %s52
      %p64 = scmp.eq.s32.totalorder %s21, 1
      %p65 = por %p63, %p64
      %p67 = scmp.ne.s32.totalorder %s52, %s66
      %p68 = scmp.eq.s32.totalorder %s21, 0
      %p69 = por %p67, %p68
      %s71 = sadd.s32 %s70, 1
      %p74 = scmp.eq.s32.totalorder %s15, 1
      %p75 = scmp.ne.s32.totalorder %s70, %s72
      %p76 = scmp.eq.s32.totalorder %s15, 0
      %p77 = por %p75, %p76
      %p78 = scmp.ne.s32.totalorder %s70, %s72
      %p79 = scmp.eq.s32.totalorder %s20, 1
      %p80 = por %p78, %p79
      %p81 = scmp.ne.s32.totalorder %s72, %s73
      %p82 = scmp.eq.s32.totalorder %s20, 0
      %p83 = por %p81, %p82
      %p84 = scmp.ne.s32.totalorder %s72, %s73
      %p85 = scmp.eq.s32.totalorder %s21, 1
      %p86 = por %p84, %p85
      %p88 = scmp.ne.s32.totalorder %s73, %s87
      %p89 = scmp.eq.s32.totalorder %s21, 0
      %p90 = por %p88, %p89
      %s91 = ssub.s32 %s15, %s22
      %p92 = scmp.eq.s32.totalorder %s91, 0
      %s94 = sadd.s32 %s93, 1
      %s95 = scalar_select %p92, %s93, %s94
      %p98 = pneg %p92
      %p99 = scmp.eq.s32.totalorder %s15, 1
      %p100 = por %p98, %p99
      %p101 = scmp.ne.s32.totalorder %s93, %s96
      %p102 = scmp.eq.s32.totalorder %s15, 0
      %p103 = por %p101, %p102
      %p104 = scmp.ne.s32.totalorder %s93, %s96
      %p105 = scmp.eq.s32.totalorder %s20, 1
      %p106 = por %p104, %p105
      %p107 = scmp.ne.s32.totalorder %s96, %s97
      %p108 = scmp.eq.s32.totalorder %s20, 0
      %p109 = por %p107, %p108
      %p110 = scmp.ne.s32.totalorder %s96, %s97
      %p111 = scmp.eq.s32.totalorder %s21, 1
      %p112 = por %p110, %p111
      %p114 = scmp.ne.s32.totalorder %s97, %s113
      %p115 = scmp.eq.s32.totalorder %s21, 0
      %p116 = por %p114, %p115
      %p117 = scmp.le.s32.totalorder 1, %s15
      %p118 = scmp.lt.s32.totalorder %s15, 3
      %p119 = pnand %p117, %p118
      %p120 = pneg %p119
      // Predicated region
      $region9: #{tpu_custom_call.1} parent=5 // pred_check
        _
      $region10: #{tpu_custom_call.1} parent=5 // pred_check_branch
        %122 = sbr.rel (%p119) target = $region12
      $region11: #{tpu_custom_call.1} parent=5 // pred_region
        %s123 = ssub.s32 %s15, 1
        // Predicated region
        $region13: #{tpu_custom_call.1} parent=11 // pred_check
          %p124 = pneg %p62
        $region14: #{tpu_custom_call.1} parent=11 // pred_check_branch
          %126 = sbr.rel (%p124) target = $region16
        $region15: #{tpu_custom_call.1} parent=11 // pred_region
          _
        $region16: #{tpu_custom_call.1} parent=11 // pred_fallthru
          _
        // Predicated region
        $region17: #{tpu_custom_call.1} parent=11 // pred_check
          %p127 = pneg %p83
        $region18: #{tpu_custom_call.1} parent=11 // pred_check_branch
          %129 = sbr.rel (%p127) target = $region20
        $region19: #{tpu_custom_call.1} parent=11 // pred_region
          _
        $region20: #{tpu_custom_call.1} parent=11 // pred_fallthru
          _
      $region12: #{tpu_custom_call.1} parent=5 // pred_fallthru
        _
      %p130 = scmp.lt.s32.totalorder %s15, 2
      // Predicated region
      $region21: #{tpu_custom_call.1} parent=5 // pred_check
        %p131 = pneg %p130
      $region22: #{tpu_custom_call.1} parent=5 // pred_check_branch
        %133 = sbr.rel (%p131) target = $region24
      $region23: #{tpu_custom_call.1} parent=5 // pred_region
        // Predicated region
        $region25: #{tpu_custom_call.1} parent=23 // pred_check
          %p134 = pneg %p35
        $region26: #{tpu_custom_call.1} parent=23 // pred_check_branch
          %136 = sbr.rel (%p134) target = $region28
        $region27: #{tpu_custom_call.1} parent=23 // pred_region
          %s137 = sand.u32 %s25, 1
          %s138 = scalar_lea.sflag [#allocation3], %s137
          %s139 = sand.u32 %s25, 1
          %s140 = smul.addr %s139, 32
          %s141 = scalar_lea.vmem [#allocation2], %s140
          %s142 = smul.u32 4, %s15
          %144 = vsyncadd %s138, 0
          %s145 = smul.addr %s142, 2
          %s146 = smul.addr %s145, 4
          %s147 = scalar_lea.hbm %s0, %s146
          %s148 = sshll.u32 %s147, 4
          %s149 = int_to_ptr.hbm [resolvable:$true] %s148
          %s150 = sshll.u32 %s141, 4
          %s151 = int_to_ptr.vmem [resolvable:$true] %s150
          %156 = dma.hbm_to_vmem [thread:$0]  %s149, 512, %s151, %s138, 128, 128, 8
        $region28: #{tpu_custom_call.1} parent=23 // pred_fallthru
          _
      $region24: #{tpu_custom_call.1} parent=5 // pred_fallthru
        _
      %p157 = scmp.le.s32.totalorder 1, %s15
      %p158 = scmp.lt.s32.totalorder %s15, 3
      %p159 = pnand %p157, %p158
      %p160 = pneg %p159
      // Predicated region
      $region29: #{tpu_custom_call.1} parent=5 // pred_check
        _
      $region30: #{tpu_custom_call.1} parent=5 // pred_check_branch
        %162 = sbr.rel (%p159) target = $region32
      $region31: #{tpu_custom_call.1} parent=5 // pred_region
        %s163 = ssub.s32 %s15, 1
        %s164 = sand.u32 %s28, 1
        %s165 = scalar_lea.sflag [#allocation3], %s164
        %s166 = sand.u32 %s28, 1
        %s167 = smul.addr %s166, 32
        %s168 = scalar_lea.vmem [#allocation2], %s167
        // Predicated region
        $region33: #{tpu_custom_call.1} parent=31 // pred_check
          %p169 = pneg %p41
        $region34: #{tpu_custom_call.1} parent=31 // pred_check_branch
          %171 = sbr.rel (%p169) target = $region36
        $region35: #{tpu_custom_call.1} parent=31 // pred_region
          %173 = dma.done %s165, 512
        $region36: #{tpu_custom_call.1} parent=31 // pred_fallthru
          _
        %s174 = sand.u32 %s28, 1
        %s175 = scalar_lea.sflag [#allocation3], %s174
        %s176 = sand.u32 %s28, 1
        %s177 = smul.addr %s176, 32
        %s178 = scalar_lea.vmem [#allocation2], %s177
        %p179 = pneg %p41
        %p180 = pneg %p38
        %p181 = pneg %p62
        %p182 = pneg %p59
        %p183 = pneg %p83
        %p184 = pneg %p80
        %p185 = pneg %p109
        %p186 = pneg %p106
        %s187 = sand.u32 %s96, 1
        %s188 = scalar_lea.sflag [#allocation4], %s187
        %s189 = sand.u32 %s96, 1
        %s190 = smul.addr %s189, 32
        %s191 = scalar_lea.vmem [#allocation5], %s190
        %s192 = smul.u32 4, %s20
        %s193 = smul.u32 4, %s20
        %v194 = vld [vmem:[%s168] sm:$0xff]
        %v195 = vld [vmem:[%s168 + $0x8] sm:$0xff]
        %v196 = vld [vmem:[%s168 + $0x10] sm:$0xff]
        %v197 = vld [vmem:[%s168 + $0x18] sm:$0xff]
        %v198 = vlaneseq
        %v199 = vand.u32 %v198, 127
        %v200 = vadd.s32 %v199, 128
        %vm201 = vcmp.lt.s32.totalorder %v199, 64
        %vm202 = vcmp.lt.s32.totalorder %v200, 64
        %vm203 = vcmp.lt.s32.totalorder %v199, 128
        %vm204 = vcmp.lt.s32.totalorder %v200, 128
        %v205 = vmul.f32 %v194, 0.015625
        %v206 = vmul.f32 %v195, 0.015625
        %v207 = vmul.f32 %v196, 0.015625
        %v208 = vmul.f32 %v197, 0.015625
        %213 = vst [vmem:[#allocation1] ss:$2 sm:$0xff] %v205
        %v214 = vld.sshfl [vmem:[#allocation1] sm:$0xff pattern:$0x75316420]
        %v215 = vld.sshfl [vmem:[#allocation1 + $0x8] sm:$0xff pattern:$0x75316420]
        %s216 = scalar_lea.vmem [#allocation1], 16
        %217 = vst [vmem:[%s216] ss:$2 sm:$0xff] %v206
        %v218 = vld.sshfl [vmem:[#allocation1 + $0x10] sm:$0xff pattern:$0x75316420]
        %v219 = vld.sshfl [vmem:[#allocation1 + $0x18] sm:$0xff pattern:$0x75316420]
        %s220 = scalar_lea.vmem [#allocation1], 32
        %221 = vst [vmem:[%s220] ss:$2 sm:$0xff] %v207
        %v222 = vld.sshfl [vmem:[#allocation1 + $0x20] sm:$0xff pattern:$0x75316420]
        %v223 = vld.sshfl [vmem:[#allocation1 + $0x28] sm:$0xff pattern:$0x75316420]
        %s224 = scalar_lea.vmem [#allocation1], 48
        %225 = vst [vmem:[%s224] ss:$2 sm:$0xff] %v208
        %v226 = vld.sshfl [vmem:[#allocation1 + $0x30] sm:$0xff pattern:$0x75316420]
        %v227 = vld.sshfl [vmem:[#allocation1 + $0x38] sm:$0xff pattern:$0x75316420]
        %vm236 = vcmask 1043456
        %v237 = vsel %vm236, %v214, 0.0
        %vm238 = vcmask 519168
        %v239 = vsel %vm238, %v215, 0.0
        %v240 = vadd.f32 %v237, %v239
        %241 = vadd.xlane.f32.xlu0 %v240
        %v242 = vpop.xlane.xlu0 %241
        %v243 = vsel %vm236, %v218, 0.0
        %v244 = vsel %vm238, %v219, 0.0
        %v245 = vadd.f32 %v243, %v244
        %246 = vadd.xlane.f32.xlu0 %v245
        %v247 = vpop.xlane.xlu0 %246
        %v248 = vsel %vm236, %v222, 0.0
        %v249 = vsel %vm238, %v223, 0.0
        %v250 = vadd.f32 %v248, %v249
        %251 = vadd.xlane.f32.xlu0 %v250
        %v252 = vpop.xlane.xlu0 %251
        %v253 = vsel %vm236, %v226, 0.0
        %v254 = vsel %vm238, %v227, 0.0
        %v255 = vadd.f32 %v253, %v254
        %256 = vadd.xlane.f32.xlu0 %v255
        %v257 = vpop.xlane.xlu0 %256
        %v258 = vld [vmem:[%s1] sm:$0xf]
        %v263 = vperm.slane %v242, %v199
        %v264 = vperm.slane %v247, %v199
        %v265 = vperm.slane %v252, %v199
        %v266 = vperm.slane %v257, %v199
        %vm267 = vcmask 1041409
        %v268 = vsel %vm267, %v264, %v263
        %vm269 = vcmask 1042434
        %v270 = vsel %vm269, %v265, %v268
        %vm271 = vcmask 1043459
        %v272 = vsel %vm271, %v266, %v270
        %vm273 = vcmask 31744
        %v274 = vsel %vm273, %v272, 0
        %v277 = vsel %vm236, %v258, 0
        %279 = vmatpush.msra.mxu0 0.0
        %280 = vmatpush.msra.mxu0 0.0
        %281 = vmatpush.msra.mxu0 0.0
        %282 = vmatpush.msra.mxu0 0.0
        %283 = vmatpush.msra.mxu0 0.0
        %284 = vmatpush.msra.mxu0 0.0
        %285 = vmatpush.msra.mxu0 0.0
        %286 = vmatpush.msra.mxu0 0.0
        %287 = vmatpush.msra.mxu0 0.0
        %288 = vmatpush.msra.mxu0 0.0
        %289 = vmatpush.msra.mxu0 0.0
        %290 = vmatpush.msra.mxu0 0.0
        %291 = vmatpush.msra.mxu0 0.0
        %292 = vmatpush.msra.mxu0 0.0
        %293 = vmatpush.msra.mxu0 0.0
        %294 = vmatpush.msra.mxu0 %v277
        %295 = vmatmul.f32.gmra.mxu0 %v274
        %v296 = vpop.f32.mrf.mxu0
        %v297 = vadd.f32 0.0, %v296
        %298 = vdwg.mxu0
        %v299 = vmax.f32 %v297, 0.0
        %v300 = vld [vmem:[%s2] sm:$0xff]
        %v301 = vld [vmem:[%s2 + $0x8] sm:$0xff]
        %v302 = vld [vmem:[%s2 + $0x10] sm:$0xff]
        %v303 = vld [vmem:[%s2 + $0x18] sm:$0xff]
        %vm304 = vcmask 261120
        %v306 = vsel %vm304, %v299, 0
        %308 = vmatpush.msra.mxu0 0.0
        %309 = vmatpush.msra.mxu0 0.0
        %310 = vmatpush.msra.mxu0 0.0
        %311 = vmatpush.msra.mxu0 0.0
        %312 = vmatpush.msra.mxu0 0.0
        %313 = vmatpush.msra.mxu0 0.0
        %314 = vmatpush.msra.mxu0 0.0
        %315 = vmatpush.msra.mxu0 0.0
        %316 = vmatpush.msra.mxu0 0.0
        %317 = vmatpush.msra.mxu0 0.0
        %318 = vmatpush.msra.mxu0 0.0
        %319 = vmatpush.msra.mxu0 0.0
        %320 = vmatpush.msra.mxu0 %v303
        %321 = vmatpush.msra.mxu0 %v302
        %322 = vmatpush.msra.mxu0 %v301
        %323 = vmatpush.msra.mxu0 %v300
        %324 = vmatmul.f32.gmra.mxu0 %v306
        %v325 = vpop.f32.mrf.mxu0
        %v326 = vadd.f32 0.0, %v325
        %327 = vdwg.mxu0
        %329 = vrot.lane.b32.xlu0 %v326, 124
        %v330 = vpop.permute.xlu0 %329
        %v332 = vmax.f32 %v326, %v330
        %333 = vrot.lane.b32.xlu0 %v326, 120
        %v334 = vpop.permute.xlu0 %333
        %v336 = vmax.f32 %v332, %v334
        %v337 = vsub.f32 %v326, %v336
        %v338 = vmul.f32 %v337, 1.442695
        %v339 = vpow.pop %v338
        %341 = vrot.lane.b32.xlu0 %v336, 4
        %v342 = vpop.permute.xlu0 %341
        %v344 = vsub.f32 %v326, %v342
        %v345 = vmul.f32 %v344, 1.442695
        %v346 = vpow.pop %v345
        %347 = vrot.lane.b32.xlu0 %v336, 8
        %v348 = vpop.permute.xlu0 %347
        %v350 = vsub.f32 %v326, %v348
        %v351 = vmul.f32 %v350, 1.442695
        %v352 = vpow.pop %v351
        %354 = vrot.lane.b32.xlu0 %v346, 124
        %v355 = vpop.permute.xlu0 %354
        %v357 = vadd.f32 %v339, %v355
        %359 = vrot.lane.b32.xlu0 %v352, 120
        %v360 = vpop.permute.xlu0 %359
        %v362 = vadd.f32 %v357, %v360
        %v363 = vrcp.pop %v362
        %v364 = vmul.f32 %v362, %v363
        %v365 = vsub.f32 1.0, %v364
        %v366 = vmul.f32 %v363, %v365
        %v367 = vadd.f32 %v363, %v366
        %vm368 = vweird.f32 %v362
        %vm369 = vweird.f32 %v363
        %vm370 = vmor %vm368, %vm369
        %v371 = vsel %vm370, %v363, %v367
        %v372 = vand.u32 2147483647, %v362
        %vm373 = vcmp.eq.f32.partialorder %v372, 8.507059e+37
        %v374 = vand.u32 %v362, 2147483648
        %v375 = vor.u32 1.1754944e-38, %v374
        %v376 = vsel %vm373, %v375, %v371
        %v377 = vmul.f32 %v339, %v376
        %v378 = vperm.slane %v377, 0
        %v379 = vlaneseq
        %v380 = vshrl.u32 %v379, 7
        %382 = vset.pattern.permute.xlu0 %v380
        %383 = vperm.xlu0 %382, %v378
        %v384 = vpop.permute.xlu0 %383
        %v385 = vperm.slane %v377, 1
        %v386 = vlaneseq
        %v387 = vshrl.u32 %v386, 7
        %389 = vset.pattern.permute.xlu0 %v387
        %390 = vperm.xlu0 %389, %v385
        %v391 = vpop.permute.xlu0 %390
        %v392 = vperm.slane %v377, 2
        %v393 = vlaneseq
        %v394 = vshrl.u32 %v393, 7
        %396 = vset.pattern.permute.xlu0 %v394
        %397 = vperm.xlu0 %396, %v392
        %v398 = vpop.permute.xlu0 %397
        %v399 = vperm.slane %v377, 3
        %v400 = vlaneseq
        %v401 = vshrl.u32 %v400, 7
        %403 = vset.pattern.permute.xlu0 %v401
        %404 = vperm.xlu0 %403, %v399
        %v405 = vpop.permute.xlu0 %404
        %407 = vrot.lane.b32.xlu0 %v376, 4
        %v408 = vpop.permute.xlu0 %407
        %v410 = vmul.f32 %v346, %v408
        %v411 = vperm.slane %v410, 0
        %v412 = vlaneseq
        %v413 = vshrl.u32 %v412, 7
        %v414 = vadd.s32 %v413, 4
        %415 = vset.pattern.permute.xlu0 %v414
        %416 = vperm.xlu0 %415, %v411
        %v417 = vpop.permute.xlu0 %416
        %v418 = vperm.slane %v410, 1
        %v419 = vlaneseq
        %v420 = vshrl.u32 %v419, 7
        %v421 = vadd.s32 %v420, 4
        %422 = vset.pattern.permute.xlu0 %v421
        %423 = vperm.xlu0 %422, %v418
        %v424 = vpop.permute.xlu0 %423
        %v425 = vperm.slane %v410, 2
        %v426 = vlaneseq
        %v427 = vshrl.u32 %v426, 7
        %v428 = vadd.s32 %v427, 4
        %429 = vset.pattern.permute.xlu0 %v428
        %430 = vperm.xlu0 %429, %v425
        %v431 = vpop.permute.xlu0 %430
        %v432 = vperm.slane %v410, 3
        %v433 = vlaneseq
        %v434 = vshrl.u32 %v433, 7
        %v435 = vadd.s32 %v434, 4
        %436 = vset.pattern.permute.xlu0 %v435
        %437 = vperm.xlu0 %436, %v432
        %v438 = vpop.permute.xlu0 %437
        %439 = vrot.lane.b32.xlu0 %v376, 8
        %v440 = vpop.permute.xlu0 %439
        %v442 = vmul.f32 %v352, %v440
        %v443 = vperm.slane %v442, 0
        %v444 = vlaneseq
        %v445 = vshrl.u32 %v444, 7
        %v446 = vadd.s32 %v445, 8
        %447 = vset.pattern.permute.xlu0 %v446
        %448 = vperm.xlu0 %447, %v443
        %v449 = vpop.permute.xlu0 %448
        %v450 = vperm.slane %v442, 1
        %v451 = vlaneseq
        %v452 = vshrl.u32 %v451, 7
        %v453 = vadd.s32 %v452, 8
        %454 = vset.pattern.permute.xlu0 %v453
        %455 = vperm.xlu0 %454, %v450
        %v456 = vpop.permute.xlu0 %455
        %v457 = vperm.slane %v442, 2
        %v458 = vlaneseq
        %v459 = vshrl.u32 %v458, 7
        %v460 = vadd.s32 %v459, 8
        %461 = vset.pattern.permute.xlu0 %v460
        %462 = vperm.xlu0 %461, %v457
        %v463 = vpop.permute.xlu0 %462
        %v464 = vperm.slane %v442, 3
        %v465 = vlaneseq
        %v466 = vshrl.u32 %v465, 7
        %v467 = vadd.s32 %v466, 8
        %468 = vset.pattern.permute.xlu0 %v467
        %469 = vperm.xlu0 %468, %v464
        %v470 = vpop.permute.xlu0 %469
        %v471 = vsel %vm203, 1, 0
        %v472 = vsel %vm204, 1, 0
        %vm473 = vcmp.eq.s32.totalorder %v471, 1
        %vm474 = vcmp.eq.s32.totalorder %v472, 1
        %v475 = vsel %vm473, %v417, %v449
        %v476 = vsel %vm474, %v417, %v449
        %v477 = vsel %vm473, %v424, %v456
        %v478 = vsel %vm474, %v424, %v456
        %v479 = vsel %vm473, %v431, %v463
        %v480 = vsel %vm474, %v431, %v463
        %v481 = vsel %vm473, %v438, %v470
        %v482 = vsel %vm474, %v438, %v470
        %v483 = vsel %vm201, 1, 0
        %v484 = vsel %vm202, 1, 0
        %vm485 = vcmp.eq.s32.totalorder %v483, 1
        %vm486 = vcmp.eq.s32.totalorder %v484, 1
        %v487 = vsel %vm485, %v384, %v475
        %v488 = vsel %vm486, %v384, %v476
        %v489 = vsel %vm485, %v391, %v477
        %v490 = vsel %vm486, %v391, %v478
        %v491 = vsel %vm485, %v398, %v479
        %v492 = vsel %vm486, %v398, %v480
        %v493 = vsel %vm485, %v405, %v481
        %v494 = vsel %vm486, %v405, %v482
        %v503 = vrot.slane %v488, 4
        %v504 = vrot.slane %v490, 4
        %v505 = vrot.slane %v492, 4
        %v506 = vrot.slane %v494, 4
        %v507 = vsel %vm236, %v487, %v503
        %v508 = vsel %vm236, %v489, %v504
        %v509 = vsel %vm236, %v491, %v505
        %v510 = vsel %vm236, %v493, %v506
        %v515 = vmul.f32 %v194, %v507
        %v516 = vmul.f32 %v195, %v508
        %v517 = vmul.f32 %v196, %v509
        %v518 = vmul.f32 %v197, %v510
        %vm519 = vcmask 523268
        %vm520 = vmor %vm519, %vm236
        %521 = vst.msk [vmem:[%s191] sm:$0xff] %vm520, %v515
        %522 = vst.msk [vmem:[%s191 + $0x8] sm:$0xff] %vm520, %v516
        %523 = vst.msk [vmem:[%s191 + $0x10] sm:$0xff] %vm520, %v517
        %524 = vst.msk [vmem:[%s191 + $0x18] sm:$0xff] %vm520, %v518
        %s525 = sand.u32 %s96, 1
        %s526 = scalar_lea.sflag [#allocation4], %s525
        %s527 = sand.u32 %s96, 1
        %s528 = smul.addr %s527, 32
        %s529 = scalar_lea.vmem [#allocation5], %s528
        // Predicated region
        $region37: #{tpu_custom_call.1} parent=31 // pred_check
          %p530 = pneg %p106
        $region38: #{tpu_custom_call.1} parent=31 // pred_check_branch
          %532 = sbr.rel (%p530) target = $region40
        $region39: #{tpu_custom_call.1} parent=31 // pred_region
          %s533 = smul.u32 4, %s20
          %535 = vsyncadd %s526, 0
          %s536 = smul.addr %s533, 2
          %s537 = smul.addr %s536, 4
          %s538 = scalar_lea.hbm %s3, %s537
          %s539 = sshll.u32 %s529, 4
          %s540 = int_to_ptr.vmem [resolvable:$true] %s539
          %s541 = sshll.u32 %s538, 4
          %s542 = int_to_ptr.hbm [resolvable:$true] %s541
          %547 = dma.vmem_to_hbm [thread:$0]  %s540, 512, %s542, %s526, 128, 128, 8
        $region40: #{tpu_custom_call.1} parent=31 // pred_fallthru
          _
      $region32: #{tpu_custom_call.1} parent=5 // pred_fallthru
        _
      %p548 = scmp.le.s32.totalorder 2, %s15
      // Predicated region
      $region41: #{tpu_custom_call.1} parent=5 // pred_check
        %p549 = pneg %p548
      $region42: #{tpu_custom_call.1} parent=5 // pred_check_branch
        %551 = sbr.rel (%p549) target = $region44
      $region43: #{tpu_custom_call.1} parent=5 // pred_region
        %s552 = ssub.s32 %s15, 2
        // Predicated region
        $region45: #{tpu_custom_call.1} parent=43 // pred_check
          %p553 = pneg %p112
        $region46: #{tpu_custom_call.1} parent=43 // pred_check_branch
          %555 = sbr.rel (%p553) target = $region48
        $region47: #{tpu_custom_call.1} parent=43 // pred_region
          %s556 = sand.u32 %s97, 1
          %s557 = scalar_lea.sflag [#allocation4], %s556
          %s558 = sand.u32 %s97, 1
          %s559 = smul.addr %s558, 32
          %s560 = scalar_lea.vmem [#allocation5], %s559
          %562 = dma.done %s557, 512
        $region48: #{tpu_custom_call.1} parent=43 // pred_fallthru
          _
      $region44: #{tpu_custom_call.1} parent=5 // pred_fallthru
        _
    $region6: #{tpu_custom_call.1} parent=1 // loop_footer
      %s19 = sadd.s32 1, %s15
    $region7: #{tpu_custom_call.1} parent=1 // loop_footer_branch
      %14 = sbr.rel target = $region3
    $region8: #{tpu_custom_call.1} parent=1 // loop_exit
      _
    %563 = vsyncpa [#allocation3], 1
    %s564 = scalar_lea.sflag [#allocation3], 1
    %565 = vsyncpa %s564, 1
    %566 = vsyncpa [#allocation4], 1
    %s567 = scalar_lea.sflag [#allocation4], 1
    %568 = vsyncpa %s567, 1

</llo_original>
